<compile_context>
chip_gen: v5e
topology: v5e:2x2
jax: 0.10.0
libtpu: 0.0.40
codegen_flags: <defaults>
</compile_context>

<pallas_src>
import functools

import jax
import jax.numpy as jnp
from jax.experimental import pallas as pl
from jax.experimental.pallas import tpu as pltpu


def _addcoords_copy_kernel(x_ref, coords_ref, o_ref, *, C: int):
    """Pure copy kernel.

    x_ref:      (TB, C,        THW)  input block (flattened spatial on lanes)
    coords_ref: (n_extra,      THW)  batch-invariant coordinate planes
    o_ref:      (TB, C+extra,  THW)  output block
    """
    tb = o_ref.shape[0]
    n_extra, thw = coords_ref.shape
    # Pass-through channels (sublanes 0..C-1 of each batch sub-tile).
    o_ref[:, :C, :] = x_ref[...]
    # Coordinate channels, broadcast over the batch sub-block.
    o_ref[:, C:, :] = jnp.broadcast_to(coords_ref[...][None], (tb, n_extra, thw))


def _coord_planes(H: int, W: int, with_r: bool, dtype) -> jax.Array:
    """(n_extra, H*W) coordinate planes, matching the PyTorch semantics.

    Note: like the PyTorch module, H == 1 or W == 1 yields inf/NaN
    (division by H-1 / W-1).
    """
    hh = jnp.arange(H, dtype=jnp.float32)
    ww = jnp.arange(W, dtype=jnp.float32)
    xx = jnp.broadcast_to((2.0 * hh / (H - 1) - 1.0)[:, None], (H, W))
    yy = jnp.broadcast_to((2.0 * ww / (W - 1) - 1.0)[None, :], (H, W))
    planes = [xx.astype(dtype), yy.astype(dtype)]
    if with_r:
        planes.append(jnp.sqrt((xx - 0.5) ** 2 + (yy - 0.5) ** 2).astype(dtype))
    return jnp.stack(planes, axis=0).reshape(len(planes), H * W)


def _round_up(x: int, m: int) -> int:
    return ((x + m - 1) // m) * m


def add_coords(x: jax.Array, with_r: bool = False,
               *, vmem_budget_bytes: int = 12 * 1024 * 1024) -> jax.Array:
    """Pallas implementation of AddCoords.forward for NCHW input."""
    B, C, H, W = x.shape
    n_extra = 3 if with_r else 2
    C_out = C + n_extra
    HW = H * W
    dtype = x.dtype
    itemsize = jnp.dtype(dtype).itemsize

    coords = _coord_planes(H, W, with_r, dtype)   # tiny (n_extra, HW) side input
    x_flat = x.reshape(B, C, HW)                  # free, contiguous reshape

    # ---- lane tile: largest 128-multiple fitting the VMEM budget ------------
    # Per grid step the pipeline double-buffers every operand:
    #   ~ 2 * (C + n_extra + C_out) * THW * itemsize bytes.
    bytes_per_lane = 2 * (C + n_extra + C_out) * max(itemsize, 1)
    max_thw = max(128, (vmem_budget_bytes // bytes_per_lane) // 128 * 128)
    if HW <= max_thw:
        thw, n_hw = HW, 1                         # full lane extent: always legal
    else:
        n_hw = pl.cdiv(HW, max_thw)
        thw = _round_up(pl.cdiv(HW, n_hw), 128)   # balanced, 128-aligned, <= max_thw
        n_hw = pl.cdiv(HW, thw)                   # boundary block masked by Pallas

    # ---- batch tile: amortize per-step overhead when spatial extent is small,
    # but keep >= 2 grid steps so both TensorCores (v7x) get work. ------------
    tb = 1
    if n_hw == 1 and B >= 2:
        per_b = 2 * (C + C_out) * HW * itemsize
        tb = int(max(1, min(B // 2, vmem_budget_bytes // max(per_b, 1))))
    n_b = pl.cdiv(B, tb)

    kernel = functools.partial(_addcoords_copy_kernel, C=C)

    out_flat = pl.pallas_call(
        kernel,
        out_shape=jax.ShapeDtypeStruct((B, C_out, HW), dtype),
        grid_spec=pltpu.PrefetchScalarGridSpec(
            num_scalar_prefetch=0,
            grid=(n_b, n_hw),
            in_specs=[
                pl.BlockSpec((tb, C, thw), lambda b, t: (b, 0, t)),
                pl.BlockSpec((n_extra, thw), lambda b, t: (0, t)),
            ],
            out_specs=pl.BlockSpec((tb, C_out, thw), lambda b, t: (b, 0, t)),
        ),
        compiler_params=pltpu.CompilerParams(
            dimension_semantics=("parallel", "parallel"),
            vmem_limit_bytes=32 * 1024 * 1024,
        ),
    )(x_flat, coords)

    return out_flat.reshape(B, C_out, H, W)


def _add_coords_ref(x: jax.Array, with_r: bool = False) -> jax.Array:
    """Pure-JAX reference mirroring the PyTorch semantics."""
    B, C, H, W = x.shape
    hh = jnp.arange(H, dtype=jnp.float32)
    ww = jnp.arange(W, dtype=jnp.float32)
    xx = jnp.broadcast_to((2.0 * hh / (H - 1) - 1.0)[:, None], (H, W))
    yy = jnp.broadcast_to((2.0 * ww / (W - 1) - 1.0)[None, :], (H, W))
    xx_c = jnp.broadcast_to(xx, (B, 1, H, W)).astype(x.dtype)
    yy_c = jnp.broadcast_to(yy, (B, 1, H, W)).astype(x.dtype)
    parts = [x, xx_c, yy_c]
    if with_r:
        parts.append(jnp.sqrt((xx_c - 0.5) ** 2 + (yy_c - 0.5) ** 2).astype(x.dtype))
    return jnp.concatenate(parts, axis=1)


if __name__ == "__main__":
    key = jax.random.PRNGKey(0)
    B, C, H, W = 2, 4, 16, 16
    x = jax.random.normal(key, (B, C, H, W), dtype=jnp.float32)

    # with_r = False (module default)
    out = jax.block_until_ready(add_coords(x, with_r=False))
    ref = _add_coords_ref(x, with_r=False)
    assert out.shape == (B, C + 2, H, W), out.shape
    assert jnp.allclose(out, ref, atol=1e-6, rtol=1e-6)

    # with_r = True branch also exercised
    out_r = jax.block_until_ready(add_coords(x, with_r=True))
    ref_r = _add_coords_ref(x, with_r=True)
    assert out_r.shape == (B, C + 3, H, W), out_r.shape
    assert jnp.allclose(out_r, ref_r, atol=1e-6, rtol=1e-6)

    print("KERNEL_OK")
</pallas_src>

<mosaic_0001>
module attributes {stable_mosaic.version = 11 : i64} {
  func.func @_addcoords_copy_kernel(%arg0: i32, %arg1: i32, %arg2: memref<1x4x256xf32, #tpu.memory_space<vmem>>, %arg3: memref<2x256xf32, #tpu.memory_space<vmem>>, %arg4: memref<1x6x256xf32, #tpu.memory_space<vmem>>) attributes {dimension_semantics = [#tpu.dimension_semantics<parallel>, #tpu.dimension_semantics<parallel>], iteration_bounds = array<i64: 2, 1>, scalar_prefetch = 0 : i64, scratch_operands = 0 : i64, tpu.core_type = #tpu.core_type<tc>, window_params = [{transform_indices = @transform_0, window_bounds = array<i64: 1, 4, 256>}, {transform_indices = @transform_1, window_bounds = array<i64: 2, 256>}, {transform_indices = @transform_2, window_bounds = array<i64: 1, 6, 256>}]} {
    %c0 = arith.constant 0 : index
    %c0_0 = arith.constant 0 : index
    %c0_1 = arith.constant 0 : index
    %0 = vector.load %arg2[%c0, %c0_0, %c0_1] : memref<1x4x256xf32, #tpu.memory_space<vmem>>, vector<1x4x256xf32>
    %c0_2 = arith.constant 0 : index
    %c0_3 = arith.constant 0 : index
    %c0_4 = arith.constant 0 : index
    %1 = vector.load %arg4[%c0_2, %c0_3, %c0_4] : memref<1x6x256xf32, #tpu.memory_space<vmem>>, vector<1x4x256xf32>
    tpu.vector_store %arg4[%c0_2, %c0_3, %c0_4], %0 {strides = array<i32>} : memref<1x6x256xf32, #tpu.memory_space<vmem>>, vector<1x4x256xf32>,
    %c0_5 = arith.constant 0 : index
    %c0_6 = arith.constant 0 : index
    %2 = vector.load %arg3[%c0_5, %c0_6] : memref<2x256xf32, #tpu.memory_space<vmem>>, vector<2x256xf32>
    %3 = vector.shape_cast %2 : vector<2x256xf32> to vector<1x2x256xf32>
    %c0_7 = arith.constant 0 : index
    %c4 = arith.constant 4 : index
    %c0_8 = arith.constant 0 : index
    %4 = vector.load %arg4[%c0_7, %c4, %c0_8] : memref<1x6x256xf32, #tpu.memory_space<vmem>>, vector<1x2x256xf32>
    tpu.vector_store %arg4[%c0_7, %c4, %c0_8], %3 {strides = array<i32>} : memref<1x6x256xf32, #tpu.memory_space<vmem>>, vector<1x2x256xf32>,
    return
  }
  func.func @transform_0(%arg0: i32, %arg1: i32) -> (i32, i32, i32) {
    %c0_i32 = arith.constant 0 : i32
    %c0_i32_0 = arith.constant 0 : i32
    return %arg0, %c0_i32, %arg1 : i32, i32, i32
  }
  func.func @transform_1(%arg0: i32, %arg1: i32) -> (i32, i32) {
    %c0_i32 = arith.constant 0 : i32
    %c0_i32_0 = arith.constant 0 : i32
    return %c0_i32, %arg1 : i32, i32
  }
  func.func @transform_2(%arg0: i32, %arg1: i32) -> (i32, i32, i32) {
    %c0_i32 = arith.constant 0 : i32
    %c0_i32_0 = arith.constant 0 : i32
    return %arg0, %c0_i32, %arg1 : i32, i32, i32
  }
}

</mosaic_0001>

<llo_original>
// kernel: tpu_custom_call.1
$region0: #{tpu_custom_call.1}
  #allocation0 [shape = 'u32[]', space=smem, size = 0x4, offset = 0x4, fixed_abs, tag = 'smem constant byte address 0x4 - core index']
  #allocation1 [shape = 'u32[72,128]{1,0:T(1,128)}', space=vmem, size = 0x9000, scoped, tag = 'internal scratch']
  %s0 = inlined_call_operand.hbm [shape: f32[2,4,256], index: 0, kind: input, shape index: {}]
  %s1 = inlined_call_operand.hbm [shape: f32[2,256], index: 1, kind: input, shape index: {}]
  %s2 = inlined_call_operand.vmem [shape: f32[2,6,256], index: 2, kind: output, shape index: {}]
  %s3 = sld [smem:[#allocation0]]
  $region49: #{tpu_custom_call.1} parent=0
    _
  %s5 = ssub.s32 1, %s3
  %s6 = scalar_select 0, %s5, %s3
  $region1: #{tpu_custom_call.1} parent=0
    #allocation2 [shape = 'u8[8192]{0}', space=vmem, size = 0x2000, scoped, tag = 'input window, operand 0']
    #allocation3 [shape = 's32[2]{0}', space=sflag, size = 0x8, scoped, tag = 'scoped memory for tpu_custom_call.1']
    #allocation4 [shape = 'u8[2048]{0}', space=vmem, size = 0x800, scoped, tag = 'input window, operand 1, single buffered']
    #allocation5 [shape = 's32[1]{0}', space=sflag, size = 0x4, scoped, tag = 'scoped memory for tpu_custom_call.1']
    %7 = vsyncpa [#allocation3], 0
    %s8 = scalar_lea.sflag [#allocation3], 1
    %9 = vsyncpa %s8, 0
    %10 = vsyncpa [#allocation5], 0
    loop: start=0, step=1, limit=4
    $region2: #{tpu_custom_call.1} parent=1 // loop_pre_header
      _
    $region3: #{tpu_custom_call.1} parent=1 // loop_header
      %s12 = sphi 0, %s16
      %p13 = scmp.ge.s32.totalorder %s12, 4
      %s19 = sphi 0, %s31
      %s20 = sphi 0, %s27
      %s21 = sphi 0, %s19
      %s22 = sphi 0, %s20
      %s23 = sphi 0, %s21
      %s24 = sphi 0, %s22
      %s36 = sphi 0, %s38
      %s39 = sphi 0, %s36
      %s40 = sphi 0, %s39
      %s56 = sphi 0, %s40
      %s62 = sphi 0, %s64
      %s65 = sphi 0, %s62
      %s66 = sphi 0, %s65
      %s82 = sphi 0, %s66
      %s90 = sphi 0, %s92
      %s93 = sphi 0, %s90
      %s94 = sphi 0, %s93
      %s110 = sphi 0, %s94
    $region4: #{tpu_custom_call.1} parent=1 // loop_header_branch
      %15 = sbr.rel (%p13) target = $region8
    $region5: #{tpu_custom_call.1} parent=1 // loop_body
      %s17 = ssub.s32 %s12, 1
      %s18 = ssub.s32 %s12, 2
      %s25 = sadd.s32 1, %s20
      %p26 = scmp.ge.s32.totalorder %s25, 1
      %s27 = scalar_select %p26, 0, %s25
      %s28 = sadd.s32 1, %s19
      %s29 = scalar_select %p26, %s28, %s19
      %p30 = scmp.ge.s32.totalorder %s29, 2
      %s31 = scalar_select %p30, 0, %s29
      %s32 = ssub.s32 %s19, %s31
      %s33 = ssub.s32 %s20, %s27
      %s34 = sor.u32 %s32, %s33
      %p35 = scmp.eq.s32.totalorder %s34, 0
      %s37 = sadd.s32 %s36, 1
      %s38 = scalar_select %p35, %s36, %s37
      %p41 = pneg %p35
      %p42 = scmp.eq.s32.totalorder %s12, 1
      %p43 = por %p41, %p42
      %p44 = scmp.ne.s32.totalorder %s36, %s39
      %p45 = scmp.eq.s32.totalorder %s12, 0
      %p46 = por %p44, %p45
      %p47 = scmp.ne.s32.totalorder %s36, %s39
      %p48 = scmp.eq.s32.totalorder %s17, 1
      %p49 = por %p47, %p48
      %p50 = scmp.ne.s32.totalorder %s39, %s40
      %p51 = scmp.eq.s32.totalorder %s17, 0
      %p52 = por %p50, %p51
      %p53 = scmp.ne.s32.totalorder %s39, %s40
      %p54 = scmp.eq.s32.totalorder %s18, 1
      %p55 = por %p53, %p54
      %p57 = scmp.ne.s32.totalorder %s40, %s56
      %p58 = scmp.eq.s32.totalorder %s18, 0
      %p59 = por %p57, %p58
      %s60 = ssub.s32 %s20, %s27
      %p61 = scmp.eq.s32.totalorder %s60, 0
      %s63 = sadd.s32 %s62, 1
      %s64 = scalar_select %p61, %s62, %s63
      %p67 = pneg %p61
      %p68 = scmp.eq.s32.totalorder %s12, 1
      %p69 = por %p67, %p68
      %p70 = scmp.ne.s32.totalorder %s62, %s65
      %p71 = scmp.eq.s32.totalorder %s12, 0
      %p72 = por %p70, %p71
      %p73 = scmp.ne.s32.totalorder %s62, %s65
      %p74 = scmp.eq.s32.totalorder %s17, 1
      %p75 = por %p73, %p74
      %p76 = scmp.ne.s32.totalorder %s65, %s66
      %p77 = scmp.eq.s32.totalorder %s17, 0
      %p78 = por %p76, %p77
      %p79 = scmp.ne.s32.totalorder %s65, %s66
      %p80 = scmp.eq.s32.totalorder %s18, 1
      %p81 = por %p79, %p80
      %p83 = scmp.ne.s32.totalorder %s66, %s82
      %p84 = scmp.eq.s32.totalorder %s18, 0
      %p85 = por %p83, %p84
      %s86 = ssub.s32 %s19, %s31
      %s87 = ssub.s32 %s20, %s27
      %s88 = sor.u32 %s86, %s87
      %p89 = scmp.eq.s32.totalorder %s88, 0
      %s91 = sadd.s32 %s90, 1
      %s92 = scalar_select %p89, %s90, %s91
      %p95 = pneg %p89
      %p96 = scmp.eq.s32.totalorder %s12, 1
      %p97 = por %p95, %p96
      %p98 = scmp.ne.s32.totalorder %s90, %s93
      %p99 = scmp.eq.s32.totalorder %s12, 0
      %p100 = por %p98, %p99
      %p101 = scmp.ne.s32.totalorder %s90, %s93
      %p102 = scmp.eq.s32.totalorder %s17, 1
      %p103 = por %p101, %p102
      %p104 = scmp.ne.s32.totalorder %s93, %s94
      %p105 = scmp.eq.s32.totalorder %s17, 0
      %p106 = por %p104, %p105
      %p107 = scmp.ne.s32.totalorder %s93, %s94
      %p108 = scmp.eq.s32.totalorder %s18, 1
      %p109 = por %p107, %p108
      %p111 = scmp.ne.s32.totalorder %s94, %s110
      %p112 = scmp.eq.s32.totalorder %s18, 0
      %p113 = por %p111, %p112
      %p114 = scmp.le.s32.totalorder 1, %s12
      %p115 = scmp.lt.s32.totalorder %s12, 3
      %p116 = pnand %p114, %p115
      %p117 = pneg %p116
      // Predicated region
      $region9: #{tpu_custom_call.1} parent=5 // pred_check
        _
      $region10: #{tpu_custom_call.1} parent=5 // pred_check_branch
        %119 = sbr.rel (%p116) target = $region12
      $region11: #{tpu_custom_call.1} parent=5 // pred_region
        %s120 = ssub.s32 %s12, 1
        // Predicated region
        $region13: #{tpu_custom_call.1} parent=11 // pred_check
          %p121 = pneg %p78
        $region14: #{tpu_custom_call.1} parent=11 // pred_check_branch
          %123 = sbr.rel (%p121) target = $region16
        $region15: #{tpu_custom_call.1} parent=11 // pred_region
          %s124 = smul.u32 2, %s22
          %126 = vsyncadd [#allocation5], 0
          %s127 = smul.addr %s124, 2
          %s128 = scalar_lea.hbm %s1, %s127
          %s130 = sshll.u32 %s128, 4
          %s131 = int_to_ptr.hbm [resolvable:$true] %s130
          %s132 = sshll.u32 [#allocation4], 4
          %s133 = int_to_ptr.vmem [resolvable:$true] %s132
          %135 = dma.hbm_to_vmem [thread:$0]  %s131, 64, %s133, [#allocation5]
        $region16: #{tpu_custom_call.1} parent=11 // pred_fallthru
          _
      $region12: #{tpu_custom_call.1} parent=5 // pred_fallthru
        _
      %p136 = scmp.lt.s32.totalorder %s12, 2
      // Predicated region
      $region17: #{tpu_custom_call.1} parent=5 // pred_check
        %p137 = pneg %p136
      $region18: #{tpu_custom_call.1} parent=5 // pred_check_branch
        %139 = sbr.rel (%p137) target = $region20
      $region19: #{tpu_custom_call.1} parent=5 // pred_region
        // Predicated region
        $region21: #{tpu_custom_call.1} parent=19 // pred_check
          %p140 = pneg %p46
        $region22: #{tpu_custom_call.1} parent=19 // pred_check_branch
          %142 = sbr.rel (%p140) target = $region24
        $region23: #{tpu_custom_call.1} parent=19 // pred_region
          %s143 = sand.u32 %s36, 1
          %s144 = scalar_lea.sflag [#allocation3], %s143
          %s145 = sand.u32 %s36, 1
          %s146 = smul.addr %s145, 8
          %s147 = scalar_lea.vmem [#allocation2], %s146
          %s148 = smul.u32 2, %s20
          %150 = vsyncadd %s144, 0
          %s151 = smul.addr %s19, 2
          %s152 = sadd.s32 %s148, %s151
          %s153 = smul.addr %s152, 4
          %s154 = scalar_lea.hbm %s0, %s153
          %s156 = sshll.u32 %s154, 4
          %s157 = int_to_ptr.hbm [resolvable:$true] %s156
          %s158 = sshll.u32 %s147, 4
          %s159 = int_to_ptr.vmem [resolvable:$true] %s158
          %161 = dma.hbm_to_vmem [thread:$0]  %s157, 128, %s159, %s144
        $region24: #{tpu_custom_call.1} parent=19 // pred_fallthru
          _
      $region20: #{tpu_custom_call.1} parent=5 // pred_fallthru
        _
      %p162 = scmp.le.s32.totalorder 1, %s12
      %p163 = scmp.lt.s32.totalorder %s12, 3
      %p164 = pnand %p162, %p163
      %p165 = pneg %p164
      // Predicated region
      $region25: #{tpu_custom_call.1} parent=5 // pred_check
        _
      $region26: #{tpu_custom_call.1} parent=5 // pred_check_branch
        %167 = sbr.rel (%p164) target = $region28
      $region27: #{tpu_custom_call.1} parent=5 // pred_region
        %s168 = ssub.s32 %s12, 1
        %s169 = sand.u32 %s39, 1
        %s170 = scalar_lea.sflag [#allocation3], %s169
        %s171 = sand.u32 %s39, 1
        %s172 = smul.addr %s171, 8
        %s173 = scalar_lea.vmem [#allocation2], %s172
        // Predicated region
        $region29: #{tpu_custom_call.1} parent=27 // pred_check
          %p174 = pneg %p52
        $region30: #{tpu_custom_call.1} parent=27 // pred_check_branch
          %176 = sbr.rel (%p174) target = $region32
        $region31: #{tpu_custom_call.1} parent=27 // pred_region
          %178 = dma.done %s170, 128
        $region32: #{tpu_custom_call.1} parent=27 // pred_fallthru
          _
        // Predicated region
        $region33: #{tpu_custom_call.1} parent=27 // pred_check
          %p179 = pneg %p78
        $region34: #{tpu_custom_call.1} parent=27 // pred_check_branch
          %181 = sbr.rel (%p179) target = $region36
        $region35: #{tpu_custom_call.1} parent=27 // pred_region
          %183 = dma.done [#allocation5], 64
        $region36: #{tpu_custom_call.1} parent=27 // pred_fallthru
          _
        %s184 = sand.u32 %s39, 1
        %s185 = scalar_lea.sflag [#allocation3], %s184
        %s186 = sand.u32 %s39, 1
        %s187 = smul.addr %s186, 8
        %s188 = scalar_lea.vmem [#allocation2], %s187
        %p189 = pneg %p52
        %p190 = pneg %p49
        %p191 = pneg %p78
        %p192 = pneg %p75
        %p193 = pneg %p106
        %p194 = pneg %p103
        %s195 = smul.u32 2, %s22
        %p196 = scmp.lt.s32.totalorder %s21, 1
        %s197 = scalar_select %p196, %s21, 1
        %p198 = scmp.lt.s32.totalorder %s195, 1
        %s199 = scalar_select %p198, %s195, 1
        %s200 = smul.addr %s197, 2
        %s201 = sadd.s32 %s199, %s200
        %s202 = smul.addr %s201, 8
        %s203 = scalar_lea.vmem %s2, %s202
        %s204 = smul.u32 2, %s22
        %s205 = smul.u32 2, %s22
        %s206 = smul.u32 2, %s22
        %p207 = scmp.lt.s32.totalorder %s21, 1
        %s208 = scalar_select %p207, %s21, 1
        %p209 = scmp.lt.s32.totalorder %s206, 1
        %s210 = scalar_select %p209, %s206, 1
        %s211 = smul.addr %s208, 2
        %s212 = sadd.s32 %s210, %s211
        %s213 = smul.addr %s212, 8
        %s214 = scalar_lea.vmem %s2, %s213
        %s215 = smul.u32 2, %s22
        %v216 = vld [vmem:[%s173] sm:$0xff]
        %218 = vst [vmem:[#allocation1] ss:$2 sm:$0xff] %v216
        %v219 = vld.sshfl [vmem:[#allocation1] sm:$0xff pattern:$0x75316420]
        %v220 = vld.sshfl [vmem:[#allocation1 + $0x8] sm:$0xff pattern:$0x75316420]
        %223 = vst [vmem:[%s214] sm:$0xf] %v219
        %224 = vst [vmem:[%s214 + $0x8] sm:$0xf] %v220
        %v225 = vld [vmem:[#allocation4] sm:$0xf]
        %s227 = scalar_lea.vmem [#allocation1], 2
        %228 = vst [vmem:[%s227] ss:$4 sm:$0xff] %v225
        %v229 = vld.sshfl [vmem:[#allocation1] sm:$0xff pattern:$0x73625140]
        %v230 = vld.sshfl [vmem:[#allocation1 + $0x8] sm:$0xff pattern:$0x73625140]
        %233 = vst [vmem:[%s214] sm:$0x30] %v229
        %234 = vst [vmem:[%s214 + $0x8] sm:$0x30] %v230
        %s235 = smul.u32 2, %s22
        %p236 = scmp.lt.s32.totalorder %s21, 1
        %s237 = scalar_select %p236, %s21, 1
        %p238 = scmp.lt.s32.totalorder %s235, 1
        %s239 = scalar_select %p238, %s235, 1
        %s240 = smul.addr %s237, 2
        %s241 = sadd.s32 %s239, %s240
        %s242 = smul.addr %s241, 8
        %s243 = scalar_lea.vmem %s2, %s242
        // Predicated region
        $region37: #{tpu_custom_call.1} parent=27 // pred_check
          %p244 = pneg %p103
        $region38: #{tpu_custom_call.1} parent=27 // pred_check_branch
          %246 = sbr.rel (%p244) target = $region40
        $region39: #{tpu_custom_call.1} parent=27 // pred_region
          %s247 = smul.u32 2, %s22
        $region40: #{tpu_custom_call.1} parent=27 // pred_fallthru
          _
      $region28: #{tpu_custom_call.1} parent=5 // pred_fallthru
        _
      %p248 = scmp.le.s32.totalorder 2, %s12
      // Predicated region
      $region41: #{tpu_custom_call.1} parent=5 // pred_check
        %p249 = pneg %p248
      $region42: #{tpu_custom_call.1} parent=5 // pred_check_branch
        %251 = sbr.rel (%p249) target = $region44
      $region43: #{tpu_custom_call.1} parent=5 // pred_region
        %s252 = ssub.s32 %s12, 2
        // Predicated region
        $region45: #{tpu_custom_call.1} parent=43 // pred_check
          %p253 = pneg %p109
        $region46: #{tpu_custom_call.1} parent=43 // pred_check_branch
          %255 = sbr.rel (%p253) target = $region48
        $region47: #{tpu_custom_call.1} parent=43 // pred_region
          %s256 = smul.u32 2, %s24
          %p257 = scmp.lt.s32.totalorder %s23, 1
          %s258 = scalar_select %p257, %s23, 1
          %p259 = scmp.lt.s32.totalorder %s256, 1
          %s260 = scalar_select %p259, %s256, 1
          %s261 = smul.addr %s258, 2
          %s262 = sadd.s32 %s260, %s261
          %s263 = smul.addr %s262, 8
          %s264 = scalar_lea.vmem %s2, %s263
        $region48: #{tpu_custom_call.1} parent=43 // pred_fallthru
          _
      $region44: #{tpu_custom_call.1} parent=5 // pred_fallthru
        _
    $region6: #{tpu_custom_call.1} parent=1 // loop_footer
      %s16 = sadd.s32 1, %s12
    $region7: #{tpu_custom_call.1} parent=1 // loop_footer_branch
      %11 = sbr.rel target = $region3
    $region8: #{tpu_custom_call.1} parent=1 // loop_exit
      _
    %265 = vsyncpa [#allocation3], 1
    %s266 = scalar_lea.sflag [#allocation3], 1
    %267 = vsyncpa %s266, 1
    %268 = vsyncpa [#allocation5], 1

</llo_original>
